<compile_context>
chip_gen: v6e
topology: v6e:2x2x1
jax: 0.10.0
libtpu: 0.0.40
codegen_flags: <defaults>
</compile_context>

<pallas_src>
import functools

import jax
import jax.numpy as jnp
from jax.experimental import pallas as pl
from jax.experimental.pallas import tpu as pltpu

_LN_EPS = 1e-5  # nn.LayerNorm default


def _text_projection_kernel(x_ref, w_ref, p_ref, o_ref):
    # x_ref: (TM, Din) compute dtype      w_ref: (Din, Dout) compute dtype
    # p_ref: (3, Dout) f32  rows = [bias, gamma, beta]
    # o_ref: (TM, Dout)
    x = x_ref[...]

    # Linear: one MXU matmul with f32 accumulation, then bias.
    h = jnp.dot(x, w_ref[...], preferred_element_type=jnp.float32)
    params = p_ref[...]                       # (3, Dout) f32
    h = h + params[0:1, :]                    # bias

    # ReLU.
    h = jnp.maximum(h, 0.0)

    # LayerNorm over the last (lane) dim: single-pass stats, biased var, eps=1e-5.
    n = h.shape[-1]
    inv_n = 1.0 / n
    mean = jnp.sum(h, axis=-1, keepdims=True) * inv_n
    mean_sq = jnp.sum(h * h, axis=-1, keepdims=True) * inv_n
    var = jnp.maximum(mean_sq - mean * mean, 0.0)
    inv_std = jax.lax.rsqrt(var + _LN_EPS)

    o_ref[...] = ((h - mean) * inv_std * params[1:2, :]
                  + params[2:3, :]).astype(o_ref.dtype)


def _round_up(v, m):
    return ((v + m - 1) // m) * m


def text_projection_apply(x, w, b, gamma, beta, *, tm=512,
                          compute_dtype=jnp.bfloat16,
                          out_dtype=jnp.float32):
    """Fused Linear + ReLU + LayerNorm.

    Args:
      x:     (B, T, Din) float array
      w:     (Din, Dout) weight (transposed vs. torch nn.Linear weight)
      b:     (Dout,) bias
      gamma: (Dout,) LayerNorm weight
      beta:  (Dout,) LayerNorm bias
      tm:    rows per grid step (multiple of 8; 512 is a multiple of the MXU
             height on every generation).
      compute_dtype: dtype for x / W reads and the MXU operands (accumulation
             and all LayerNorm math stay f32).
      out_dtype: output dtype.
    Returns:
      (B, T, Dout) out_dtype
    """
    B, T, Din = x.shape
    Dout = w.shape[1]
    M = B * T

    # Tile sizing: multiple of 8 (sublane), no larger than the (rounded) row
    # count.  If that leaves a single grid block but there is room for two,
    # halve the tile so both v7x TensorCores get work (near-neutral elsewhere).
    tm = max(8, _round_up(min(tm, _round_up(M, 8)), 8))
    if pl.cdiv(M, tm) < 2 and tm > 8:
        tm = max(8, (tm // 2 // 8) * 8)
    grid_m = pl.cdiv(M, tm)

    x2 = x.reshape(M, Din).astype(compute_dtype)
    w_c = w.astype(compute_dtype)
    params = jnp.stack([b, gamma, beta]).astype(jnp.float32)   # (3, Dout)

    # Scoped-VMEM budget: double-buffered x/out tiles, resident weight, packed
    # params, plus f32 intermediate headroom.  Clamp to [32 MiB, 64 MiB].
    cbytes = jnp.dtype(compute_dtype).itemsize
    obytes = jnp.dtype(out_dtype).itemsize
    est = (2 * tm * Din * cbytes          # x tile (double-buffered)
           + 2 * tm * Dout * obytes       # out tile (double-buffered)
           + 2 * Din * Dout * cbytes      # resident weight
           + 2 * 3 * Dout * 4             # packed LN/bias params
           + 2 * tm * Dout * 4)           # f32 intermediate headroom
    vmem_limit = int(min(max(2 * est, 32 * 1024 * 1024), 64 * 1024 * 1024))

    out = pl.pallas_call(
        _text_projection_kernel,
        out_shape=jax.ShapeDtypeStruct((M, Dout), out_dtype),
        grid_spec=pltpu.PrefetchScalarGridSpec(
            num_scalar_prefetch=0,
            grid=(grid_m,),
            in_specs=[
                pl.BlockSpec((tm, Din), lambda i: (i, 0)),     # activations
                pl.BlockSpec((Din, Dout), lambda i: (0, 0)),   # weight (resident)
                pl.BlockSpec((3, Dout), lambda i: (0, 0)),     # bias/gamma/beta
            ],
            out_specs=pl.BlockSpec((tm, Dout), lambda i: (i, 0)),
        ),
        compiler_params=pltpu.CompilerParams(
            dimension_semantics=("parallel",),
            vmem_limit_bytes=vmem_limit),
    )(x2, w_c, params)

    return out.reshape(B, T, Dout)


@functools.partial(jax.jit, static_argnums=())
def text_projection_forward(text_emb, w, b, gamma, beta):
    return text_projection_apply(text_emb, w, b, gamma, beta)


def text_projection_reference(text_emb, w, b, gamma, beta):
    """Pure-JAX reference (f32 math) for correctness checking."""
    h = jnp.einsum('btd,de->bte', text_emb.astype(jnp.float32),
                   w.astype(jnp.float32),
                   precision=jax.lax.Precision.HIGHEST) + b.reshape(1, 1, -1)
    h = jnp.maximum(h, 0.0)
    mean = jnp.mean(h, axis=-1, keepdims=True)
    var = jnp.mean((h - mean) ** 2, axis=-1, keepdims=True)
    h = (h - mean) / jnp.sqrt(var + _LN_EPS)
    return h * gamma.reshape(1, 1, -1) + beta.reshape(1, 1, -1)


def make_params(key, text_emb_dim, context_emb_dim):
    k1, k2, k3, k4 = jax.random.split(key, 4)
    # nn.Linear-style init, stored already transposed to (Din, Dout).
    bound = 1.0 / jnp.sqrt(text_emb_dim)
    w = jax.random.uniform(k1, (text_emb_dim, context_emb_dim), jnp.float32,
                           -bound, bound)
    b = jax.random.uniform(k2, (context_emb_dim,), jnp.float32, -bound, bound)
    gamma = 1.0 + 0.1 * jax.random.normal(k3, (context_emb_dim,), jnp.float32)
    beta = 0.1 * jax.random.normal(k4, (context_emb_dim,), jnp.float32)
    return w, b, gamma, beta


if __name__ == "__main__":
    BATCH, TEXT_LEN = 2, 8
    TEXT_EMB_DIM, CONTEXT_EMB_DIM = 32, 128   # context dim lane-dense (x128)

    key = jax.random.PRNGKey(0)
    kx, kp = jax.random.split(key)
    text_emb = jax.random.normal(kx, (BATCH, TEXT_LEN, TEXT_EMB_DIM), jnp.float32)
    w, b, gamma, beta = make_params(kp, TEXT_EMB_DIM, CONTEXT_EMB_DIM)

    out = text_projection_forward(text_emb, w, b, gamma, beta)
    out = jax.block_until_ready(out)
    assert out.shape == (BATCH, TEXT_LEN, CONTEXT_EMB_DIM)

    # Primary check: reference with the SAME bf16 quantization of x/W (the
    # deliberate bandwidth optimization); all other math is f32 in both paths.
    x_q = text_emb.astype(jnp.bfloat16).astype(jnp.float32)
    w_q = w.astype(jnp.bfloat16).astype(jnp.float32)
    ref_q = text_projection_reference(x_q, w_q, b, gamma, beta)
    assert jnp.allclose(out, ref_q, rtol=1e-3, atol=1e-3), (
        float(jnp.max(jnp.abs(out - ref_q))))

    # Sanity check vs. the full-f32 module semantics (loose tolerance only
    # covers the bf16 input quantization).
    ref_f32 = text_projection_reference(text_emb, w, b, gamma, beta)
    assert jnp.allclose(out, ref_f32, atol=0.15), (
        float(jnp.max(jnp.abs(out - ref_f32))))

    print("KERNEL_OK")
</pallas_src>

<mosaic_0001>
module attributes {stable_mosaic.version = 11 : i64} {
  func.func @_text_projection_kernel(%arg0: i32, %arg1: memref<8x32xbf16, #tpu.memory_space<vmem>>, %arg2: memref<32x128xbf16, #tpu.memory_space<vmem>>, %arg3: memref<3x128xf32, #tpu.memory_space<vmem>>, %arg4: memref<8x128xf32, #tpu.memory_space<vmem>>) attributes {dimension_semantics = [#tpu.dimension_semantics<parallel>], iteration_bounds = array<i64: 2>, scalar_prefetch = 0 : i64, scratch_operands = 0 : i64, tpu.core_type = #tpu.core_type<tc>, window_params = [{transform_indices = @transform_0, window_bounds = array<i64: 8, 32>}, {pipeline_mode = #tpu.pipeline_mode<synchronous>, transform_indices = @transform_1, window_bounds = array<i64: 32, 128>}, {pipeline_mode = #tpu.pipeline_mode<synchronous>, transform_indices = @transform_2, window_bounds = array<i64: 3, 128>}, {transform_indices = @transform_3, window_bounds = array<i64: 8, 128>}]} {
    %c0 = arith.constant 0 : index
    %c0_0 = arith.constant 0 : index
    %0 = vector.load %arg1[%c0, %c0_0] : memref<8x32xbf16, #tpu.memory_space<vmem>>, vector<8x32xbf16>
    %c0_1 = arith.constant 0 : index
    %c0_2 = arith.constant 0 : index
    %1 = vector.load %arg2[%c0_1, %c0_2] : memref<32x128xbf16, #tpu.memory_space<vmem>>, vector<32x128xbf16>
    %cst = arith.constant dense<0.000000e+00> : vector<8x128xf32>
    %2 = tpu.matmul %0, %1, %cst {dimension_numbers = #tpu.dot_dimension_numbers<[1], [0], [0], [1], [0, 0, 1, 1], [], []>} : vector<8x32xbf16>, vector<32x128xbf16>, vector<8x128xf32> -> vector<8x128xf32>
    %c0_3 = arith.constant 0 : index
    %c0_4 = arith.constant 0 : index
    %3 = vector.load %arg3[%c0_3, %c0_4] : memref<3x128xf32, #tpu.memory_space<vmem>>, vector<3x128xf32>
    %4 = vector.extract_strided_slice %3 {offsets = [0, 0], sizes = [1, 128], strides = [1, 1]} : vector<3x128xf32> to vector<1x128xf32>
    %5 = vector.broadcast %4 : vector<1x128xf32> to vector<8x128xf32>
    %6 = arith.addf %2, %5 : vector<8x128xf32>
    %cst_5 = arith.constant 0.000000e+00 : f32
    %7 = vector.broadcast %cst_5 : f32 to vector<8x128xf32>
    %8 = arith.maximumf %6, %7 : vector<8x128xf32>
    %cst_6 = arith.constant dense<0.000000e+00> : vector<8xf32>
    %9 = vector.multi_reduction <add>, %8, %cst_6 [1] : vector<8x128xf32> to vector<8xf32>
    %10 = vector.shape_cast %9 : vector<8xf32> to vector<8x1xf32>
    %cst_7 = arith.constant 7.812500e-03 : f32
    %11 = vector.broadcast %cst_7 : f32 to vector<8x1xf32>
    %12 = arith.mulf %10, %11 : vector<8x1xf32>
    %13 = arith.mulf %8, %8 : vector<8x128xf32>
    %cst_8 = arith.constant dense<0.000000e+00> : vector<8xf32>
    %14 = vector.multi_reduction <add>, %13, %cst_8 [1] : vector<8x128xf32> to vector<8xf32>
    %15 = vector.shape_cast %14 : vector<8xf32> to vector<8x1xf32>
    %cst_9 = arith.constant 7.812500e-03 : f32
    %16 = vector.broadcast %cst_9 : f32 to vector<8x1xf32>
    %17 = arith.mulf %15, %16 : vector<8x1xf32>
    %18 = arith.mulf %12, %12 : vector<8x1xf32>
    %19 = arith.subf %17, %18 : vector<8x1xf32>
    %cst_10 = arith.constant 0.000000e+00 : f32
    %20 = vector.broadcast %cst_10 : f32 to vector<8x1xf32>
    %21 = arith.maximumf %19, %20 : vector<8x1xf32>
    %cst_11 = arith.constant 9.99999974E-6 : f32
    %22 = vector.broadcast %cst_11 : f32 to vector<8x1xf32>
    %23 = arith.addf %21, %22 : vector<8x1xf32>
    %24 = math.rsqrt %23 : vector<8x1xf32>
    %25 = vector.broadcast %12 : vector<8x1xf32> to vector<8x128xf32>
    %26 = arith.subf %8, %25 : vector<8x128xf32>
    %27 = vector.broadcast %24 : vector<8x1xf32> to vector<8x128xf32>
    %28 = arith.mulf %26, %27 : vector<8x128xf32>
    %29 = vector.extract_strided_slice %3 {offsets = [1, 0], sizes = [1, 128], strides = [1, 1]} : vector<3x128xf32> to vector<1x128xf32>
    %30 = vector.broadcast %29 : vector<1x128xf32> to vector<8x128xf32>
    %31 = arith.mulf %28, %30 : vector<8x128xf32>
    %32 = vector.extract_strided_slice %3 {offsets = [2, 0], sizes = [1, 128], strides = [1, 1]} : vector<3x128xf32> to vector<1x128xf32>
    %33 = vector.broadcast %32 : vector<1x128xf32> to vector<8x128xf32>
    %34 = arith.addf %31, %33 : vector<8x128xf32>
    %c0_12 = arith.constant 0 : index
    %c0_13 = arith.constant 0 : index
    %35 = vector.load %arg4[%c0_12, %c0_13] : memref<8x128xf32, #tpu.memory_space<vmem>>, vector<8x128xf32>
    tpu.vector_store %arg4[%c0_12, %c0_13], %34 {strides = array<i32>} : memref<8x128xf32, #tpu.memory_space<vmem>>, vector<8x128xf32>,
    return
  }
  func.func @transform_0(%arg0: i32) -> (i32, i32) {
    %c0_i32 = arith.constant 0 : i32
    %c0_i32_0 = arith.constant 0 : i32
    return %arg0, %c0_i32 : i32, i32
  }
  func.func @transform_1(%arg0: i32) -> (i32, i32) {
    %c0_i32 = arith.constant 0 : i32
    %c0_i32_0 = arith.constant 0 : i32
    %c0_i32_1 = arith.constant 0 : i32
    return %c0_i32, %c0_i32_0 : i32, i32
  }
  func.func @transform_2(%arg0: i32) -> (i32, i32) {
    %c0_i32 = arith.constant 0 : i32
    %c0_i32_0 = arith.constant 0 : i32
    %c0_i32_1 = arith.constant 0 : i32
    return %c0_i32, %c0_i32_0 : i32, i32
  }
  func.func @transform_3(%arg0: i32) -> (i32, i32) {
    %c0_i32 = arith.constant 0 : i32
    %c0_i32_0 = arith.constant 0 : i32
    return %arg0, %c0_i32 : i32, i32
  }
}

</mosaic_0001>

<llo_original>
// kernel: text_projection_forward.1
$region0: #{text_projection_forward.1}
  #allocation0 [shape = 'u32[]', space=smem, size = 0x4, offset = 0x4, fixed_abs, tag = 'smem constant byte address 0x4 - core index']
  #allocation1 [shape = 'u32[144,128]{1,0:T(1,128)}', space=vmem, size = 0x12000, scoped, tag = 'internal scratch']
  %s0 = inlined_call_operand.vmem [shape: bf16[16,32], index: 0, kind: input, shape index: {}]
  %s1 = inlined_call_operand.vmem [shape: bf16[32,128], index: 1, kind: input, shape index: {}]
  %s2 = inlined_call_operand.vmem [shape: f32[3,128], index: 2, kind: input, shape index: {}]
  %s3 = inlined_call_operand.hbm [shape: f32[16,128], index: 3, kind: output, shape index: {}]
  %s4 = sld [smem:[#allocation0]]
  $region45: #{text_projection_forward.1} parent=0
    _
  %s6 = ssub.s32 1, %s4
  %s7 = scalar_select 0, %s6, %s4
  $region1: #{text_projection_forward.1} parent=0
    #allocation2 [shape = 'u8[8192]{0}', space=vmem, size = 0x2000, scoped, tag = 'output window, operand 0']
    #allocation3 [shape = 's32[2]{0}', space=sflag, size = 0x8, scoped, tag = 'scoped memory for text_projection_forward.1']
    %8 = vsyncpa [#allocation3], 0
    %s9 = scalar_lea.sflag [#allocation3], 1
    %10 = vsyncpa %s9, 0
    loop: start=0, step=1, limit=4
    $region2: #{text_projection_forward.1} parent=1 // loop_pre_header
      _
    $region3: #{text_projection_forward.1} parent=1 // loop_header
      %s12 = sphi 0, %s16
      %p13 = scmp.ge.s32.totalorder %s12, 4
      %s22 = sphi 0, %s24
      %s25 = sphi 0, %s22
      %s26 = sphi 0, %s25
      %s42 = sphi 0, %s26
      %s46 = sphi 0, %s46
      %s48 = sphi 0, %s46
      %s49 = sphi 0, %s48
      %s63 = sphi 0, %s49
      %s67 = sphi 0, %s67
      %s69 = sphi 0, %s67
      %s70 = sphi 0, %s69
      %s84 = sphi 0, %s70
      %s90 = sphi 0, %s92
      %s93 = sphi 0, %s90
      %s94 = sphi 0, %s93
      %s110 = sphi 0, %s94
    $region4: #{text_projection_forward.1} parent=1 // loop_header_branch
      %15 = sbr.rel (%p13) target = $region8
    $region5: #{text_projection_forward.1} parent=1 // loop_body
      %s17 = ssub.s32 %s12, 1
      %s18 = ssub.s32 %s12, 2
      %s19 = sadd.s32 %s12, 1
      %s20 = ssub.s32 %s12, %s19
      %p21 = scmp.eq.s32.totalorder %s20, 0
      %s23 = sadd.s32 %s22, 1
      %s24 = scalar_select %p21, %s22, %s23
      %p27 = pneg %p21
      %p28 = scmp.eq.s32.totalorder %s12, 1
      %p29 = por %p27, %p28
      %p30 = scmp.ne.s32.totalorder %s22, %s25
      %p31 = scmp.eq.s32.totalorder %s12, 0
      %p32 = por %p30, %p31
      %p33 = scmp.ne.s32.totalorder %s22, %s25
      %p34 = scmp.eq.s32.totalorder %s17, 1
      %p35 = por %p33, %p34
      %p36 = scmp.ne.s32.totalorder %s25, %s26
      %p37 = scmp.eq.s32.totalorder %s17, 0
      %p38 = por %p36, %p37
      %p39 = scmp.ne.s32.totalorder %s25, %s26
      %p40 = scmp.eq.s32.totalorder %s18, 1
      %p41 = por %p39, %p40
      %p43 = scmp.ne.s32.totalorder %s26, %s42
      %p44 = scmp.eq.s32.totalorder %s18, 0
      %p45 = por %p43, %p44
      %s47 = sadd.s32 %s46, 1
      %p50 = scmp.eq.s32.totalorder %s12, 1
      %p51 = scmp.ne.s32.totalorder %s46, %s48
      %p52 = scmp.eq.s32.totalorder %s12, 0
      %p53 = por %p51, %p52
      %p54 = scmp.ne.s32.totalorder %s46, %s48
      %p55 = scmp.eq.s32.totalorder %s17, 1
      %p56 = por %p54, %p55
      %p57 = scmp.ne.s32.totalorder %s48, %s49
      %p58 = scmp.eq.s32.totalorder %s17, 0
      %p59 = por %p57, %p58
      %p60 = scmp.ne.s32.totalorder %s48, %s49
      %p61 = scmp.eq.s32.totalorder %s18, 1
      %p62 = por %p60, %p61
      %p64 = scmp.ne.s32.totalorder %s49, %s63
      %p65 = scmp.eq.s32.totalorder %s18, 0
      %p66 = por %p64, %p65
      %s68 = sadd.s32 %s67, 1
      %p71 = scmp.eq.s32.totalorder %s12, 1
      %p72 = scmp.ne.s32.totalorder %s67, %s69
      %p73 = scmp.eq.s32.totalorder %s12, 0
      %p74 = por %p72, %p73
      %p75 = scmp.ne.s32.totalorder %s67, %s69
      %p76 = scmp.eq.s32.totalorder %s17, 1
      %p77 = por %p75, %p76
      %p78 = scmp.ne.s32.totalorder %s69, %s70
      %p79 = scmp.eq.s32.totalorder %s17, 0
      %p80 = por %p78, %p79
      %p81 = scmp.ne.s32.totalorder %s69, %s70
      %p82 = scmp.eq.s32.totalorder %s18, 1
      %p83 = por %p81, %p82
      %p85 = scmp.ne.s32.totalorder %s70, %s84
      %p86 = scmp.eq.s32.totalorder %s18, 0
      %p87 = por %p85, %p86
      %s88 = ssub.s32 %s12, %s19
      %p89 = scmp.eq.s32.totalorder %s88, 0
      %s91 = sadd.s32 %s90, 1
      %s92 = scalar_select %p89, %s90, %s91
      %p95 = pneg %p89
      %p96 = scmp.eq.s32.totalorder %s12, 1
      %p97 = por %p95, %p96
      %p98 = scmp.ne.s32.totalorder %s90, %s93
      %p99 = scmp.eq.s32.totalorder %s12, 0
      %p100 = por %p98, %p99
      %p101 = scmp.ne.s32.totalorder %s90, %s93
      %p102 = scmp.eq.s32.totalorder %s17, 1
      %p103 = por %p101, %p102
      %p104 = scmp.ne.s32.totalorder %s93, %s94
      %p105 = scmp.eq.s32.totalorder %s17, 0
      %p106 = por %p104, %p105
      %p107 = scmp.ne.s32.totalorder %s93, %s94
      %p108 = scmp.eq.s32.totalorder %s18, 1
      %p109 = por %p107, %p108
      %p111 = scmp.ne.s32.totalorder %s94, %s110
      %p112 = scmp.eq.s32.totalorder %s18, 0
      %p113 = por %p111, %p112
      %p114 = scmp.le.s32.totalorder 1, %s12
      %p115 = scmp.lt.s32.totalorder %s12, 3
      %p116 = pnand %p114, %p115
      %p117 = pneg %p116
      // Predicated region
      $region9: #{text_projection_forward.1} parent=5 // pred_check
        _
      $region10: #{text_projection_forward.1} parent=5 // pred_check_branch
        %119 = sbr.rel (%p116) target = $region12
      $region11: #{text_projection_forward.1} parent=5 // pred_region
        %s120 = ssub.s32 %s12, 1
        // Predicated region
        $region13: #{text_projection_forward.1} parent=11 // pred_check
          %p121 = pneg %p59
        $region14: #{text_projection_forward.1} parent=11 // pred_check_branch
          %123 = sbr.rel (%p121) target = $region16
        $region15: #{text_projection_forward.1} parent=11 // pred_region
          _
        $region16: #{text_projection_forward.1} parent=11 // pred_fallthru
          _
        // Predicated region
        $region17: #{text_projection_forward.1} parent=11 // pred_check
          %p124 = pneg %p80
        $region18: #{text_projection_forward.1} parent=11 // pred_check_branch
          %126 = sbr.rel (%p124) target = $region20
        $region19: #{text_projection_forward.1} parent=11 // pred_region
          _
        $region20: #{text_projection_forward.1} parent=11 // pred_fallthru
          _
      $region12: #{text_projection_forward.1} parent=5 // pred_fallthru
        _
      %p127 = scmp.lt.s32.totalorder %s12, 2
      // Predicated region
      $region21: #{text_projection_forward.1} parent=5 // pred_check
        %p128 = pneg %p127
      $region22: #{text_projection_forward.1} parent=5 // pred_check_branch
        %130 = sbr.rel (%p128) target = $region24
      $region23: #{text_projection_forward.1} parent=5 // pred_region
        // Predicated region
        $region25: #{text_projection_forward.1} parent=23 // pred_check
          %p131 = pneg %p32
        $region26: #{text_projection_forward.1} parent=23 // pred_check_branch
          %133 = sbr.rel (%p131) target = $region28
        $region27: #{text_projection_forward.1} parent=23 // pred_region
          %p134 = scmp.lt.s32.totalorder %s12, 1
          %s135 = scalar_select %p134, %s12, 1
          %s136 = smul.addr %s135, 4
          %s137 = scalar_lea.vmem %s0, %s136
        $region28: #{text_projection_forward.1} parent=23 // pred_fallthru
          _
      $region24: #{text_projection_forward.1} parent=5 // pred_fallthru
        _
      %p138 = scmp.le.s32.totalorder 1, %s12
      %p139 = scmp.lt.s32.totalorder %s12, 3
      %p140 = pnand %p138, %p139
      %p141 = pneg %p140
      // Predicated region
      $region29: #{text_projection_forward.1} parent=5 // pred_check
        _
      $region30: #{text_projection_forward.1} parent=5 // pred_check_branch
        %143 = sbr.rel (%p140) target = $region32
      $region31: #{text_projection_forward.1} parent=5 // pred_region
        %s144 = ssub.s32 %s12, 1
        %p145 = scmp.lt.s32.totalorder %s17, 1
        %s146 = scalar_select %p145, %s17, 1
        %s147 = smul.addr %s146, 4
        %s148 = scalar_lea.vmem %s0, %s147
        %p149 = pneg %p38
        %p150 = pneg %p35
        %p151 = pneg %p59
        %p152 = pneg %p56
        %p153 = pneg %p80
        %p154 = pneg %p77
        %p155 = pneg %p106
        %p156 = pneg %p103
        %s157 = sand.u32 %s93, 1
        %s158 = scalar_lea.sflag [#allocation3], %s157
        %s159 = sand.u32 %s93, 1
        %s160 = smul.addr %s159, 8
        %s161 = scalar_lea.vmem [#allocation2], %s160
        %p162 = scmp.lt.s32.totalorder %s17, 1
        %s163 = scalar_select %p162, %s17, 1
        %s164 = smul.addr %s163, 4
        %s165 = scalar_lea.vmem %s0, %s164
        %v167 = vld [vmem:[%s165] sm:$0xf]
        %v168 = vld [vmem:[%s1] sm:$0xf]
        %v169 = vld [vmem:[%s1 + $0x4] sm:$0xf]
        %v170 = vld [vmem:[%s1 + $0x8] sm:$0xf]
        %v171 = vld [vmem:[%s1 + $0xc] sm:$0xf]
        %v172 = vld [vmem:[%s2] sm:$0x7]
        %v173 = vlaneseq
        %v174 = vshrl.u32 %v173, 7
        %v175 = vsub.s32 0, %v174
        %v176 = vrot.slane %v172, %v175
        %v181 = vunpack.c.l.b16 %v168
        %v182 = vunpack.c.l.b16 %v169
        %v183 = vunpack.c.l.b16 %v170
        %v184 = vunpack.c.l.b16 %v171
        %v185 = vpack.c.b16 %v182, %v181
        %v186 = vpack.c.b16 %v184, %v183
        %vm189 = vcmask 261120
        %v191 = vsel %vm189, %v167, 0
        %193 = vmatprep.subr.bf16.mxu0 0
        %194 = vmatpush1.bf16.msra.mxu0 0
        %195 = vmatprep.subr.bf16.mxu0 0
        %196 = vmatpush1.bf16.msra.mxu0 0
        %197 = vmatprep.subr.bf16.mxu0 0
        %198 = vmatpush1.bf16.msra.mxu0 0
        %199 = vmatprep.subr.bf16.mxu0 0
        %200 = vmatpush1.bf16.msra.mxu0 0
        %201 = vmatprep.subr.bf16.mxu0 0
        %202 = vmatpush1.bf16.msra.mxu0 0
        %203 = vmatprep.subr.bf16.mxu0 0
        %204 = vmatpush1.bf16.msra.mxu0 0
        %205 = vmatprep.subr.bf16.mxu0 0
        %206 = vmatpush1.bf16.msra.mxu0 %v186
        %207 = vmatprep.subr.bf16.mxu0 0
        %208 = vmatpush1.bf16.msra.mxu0 %v185
        %209 = vmatprep.subr.bf16.mxu0 0
        %210 = vmatpush2.bf16.msra.mxu0 0
        %211 = vmatprep.subr.bf16.mxu0 0
        %212 = vmatpush2.bf16.msra.mxu0 0
        %213 = vmatprep.subr.bf16.mxu0 0
        %214 = vmatpush2.bf16.msra.mxu0 0
        %215 = vmatprep.subr.bf16.mxu0 0
        %216 = vmatpush2.bf16.msra.mxu0 0
        %217 = vmatprep.subr.bf16.mxu0 0
        %218 = vmatpush2.bf16.msra.mxu0 0
        %219 = vmatprep.subr.bf16.mxu0 0
        %220 = vmatpush2.bf16.msra.mxu0 0
        %221 = vmatprep.subr.bf16.mxu0 0
        %222 = vmatpush2.bf16.msra.mxu0 0
        %223 = vmatprep.subr.bf16.mxu0 0
        %224 = vmatpush2.bf16.msra.mxu0 0
        %225 = vmatprep.mubr.bf16.mxu0 0
        %226 = vmatmul.mubr.bf16.gmra.mxu0 %v191
        %v227 = vpop.f32.mrf.mxu0
        %v228 = vadd.f32 %v176, %v227
        %v229 = vpop.f32.mrf.mxu0
        %v230 = vpop.f32.mrf.mxu0
        %v231 = vpop.f32.mrf.mxu0
        %232 = vdwg.mxu0
        %v233 = vmax.f32 %v228, 0.0
        %234 = vadd.xlane.f32.xlu0 %v233
        %v235 = vpop.xlane.xlu0 %234
        %v236 = vmul.f32 %v235, 0.0078125
        %v237 = vmul.f32 %v233, %v233
        %238 = vadd.xlane.f32.xlu0 %v237
        %v239 = vpop.xlane.xlu0 %238
        %v240 = vmul.f32 %v239, 0.0078125
        %v241 = vmul.f32 %v236, %v236
        %v242 = vsub.f32 %v240, %v241
        %v243 = vmax.f32 %v242, 0.0
        %v244 = vadd.f32 %v243, 1e-05
        %v245 = vrsqrt.pop %v244
        %v246 = vsub.f32 %v233, %v236
        %v247 = vmul.f32 %v246, %v245
        %v248 = vlaneseq
        %v249 = vshrl.u32 %v248, 7
        %v250 = vsub.s32 1, %v249
        %v251 = vrot.slane %v172, %v250
        %v252 = vmul.f32 %v247, %v251
        %v253 = vlaneseq
        %v254 = vshrl.u32 %v253, 7
        %v255 = vsub.s32 2, %v254
        %v256 = vrot.slane %v172, %v255
        %v257 = vadd.f32 %v252, %v256
        %258 = vst [vmem:[%s161] sm:$0xff] %v257
        %s259 = sand.u32 %s93, 1
        %s260 = scalar_lea.sflag [#allocation3], %s259
        %s261 = sand.u32 %s93, 1
        %s262 = smul.addr %s261, 8
        %s263 = scalar_lea.vmem [#allocation2], %s262
        // Predicated region
        $region33: #{text_projection_forward.1} parent=31 // pred_check
          %p264 = pneg %p103
        $region34: #{text_projection_forward.1} parent=31 // pred_check_branch
          %266 = sbr.rel (%p264) target = $region36
        $region35: #{text_projection_forward.1} parent=31 // pred_region
          %s268 = ssub.s32 128, 128
          %269 = vsyncadd %s260, %s268
          %s270 = smul.addr %s17, 128
          %s271 = scalar_lea.hbm %s3, %s270
          %s273 = sshll.u32 %s263, 4
          %s274 = int_to_ptr.vmem [resolvable:$true] %s273
          %276 = dma.vmem_to_hbm [thread:$0]  %s274, 128, %s271, %s260
        $region36: #{text_projection_forward.1} parent=31 // pred_fallthru
          _
      $region32: #{text_projection_forward.1} parent=5 // pred_fallthru
        _
      %p277 = scmp.le.s32.totalorder 2, %s12
      // Predicated region
      $region37: #{text_projection_forward.1} parent=5 // pred_check
        %p278 = pneg %p277
      $region38: #{text_projection_forward.1} parent=5 // pred_check_branch
        %280 = sbr.rel (%p278) target = $region40
      $region39: #{text_projection_forward.1} parent=5 // pred_region
        %s281 = ssub.s32 %s12, 2
        // Predicated region
        $region41: #{text_projection_forward.1} parent=39 // pred_check
          %p282 = pneg %p109
        $region42: #{text_projection_forward.1} parent=39 // pred_check_branch
          %284 = sbr.rel (%p282) target = $region44
        $region43: #{text_projection_forward.1} parent=39 // pred_region
          %s285 = sand.u32 %s94, 1
          %s286 = scalar_lea.sflag [#allocation3], %s285
          %s287 = sand.u32 %s94, 1
          %s288 = smul.addr %s287, 8
          %s289 = scalar_lea.vmem [#allocation2], %s288
          %290 = dma.done %s286, 128
        $region44: #{text_projection_forward.1} parent=39 // pred_fallthru
          _
      $region40: #{text_projection_forward.1} parent=5 // pred_fallthru
        _
    $region6: #{text_projection_forward.1} parent=1 // loop_footer
      %s16 = sadd.s32 1, %s12
    $region7: #{text_projection_forward.1} parent=1 // loop_footer_branch
      %11 = sbr.rel target = $region3
    $region8: #{text_projection_forward.1} parent=1 // loop_exit
      _
    %291 = vsyncpa [#allocation3], 1
    %s292 = scalar_lea.sflag [#allocation3], 1
    %293 = vsyncpa %s292, 1

</llo_original>
